<compile_context>
chip_gen: v6e
topology: v6e:2x2x1
jax: 0.10.0
libtpu: 0.0.40
codegen_flags: <defaults>
</compile_context>

<pallas_src>
import functools
import math

import jax
import jax.numpy as jnp
from jax.experimental import pallas as pl
from jax.experimental.pallas import tpu as pltpu


_MIN_GRID = 4           # prefer >= 4 grid steps (pipeline + v7x two TCs)
_MAX_STATIC_ROWS = 256  # static per-row unroll limit in the general pad path


@functools.lru_cache(maxsize=None)
def _vmem_capacity_bytes():
    """Physical VMEM per TensorCore; conservative fallback if query fails."""
    try:
        cap = int(pltpu.get_tpu_info().vmem_capacity_bytes)
        if cap > 0:
            return cap
    except Exception:
        pass
    return 64 * 1024 * 1024  # v7x per-TC VMEM (the smallest of v5e/v6e/v7x)


def _default_vmem_limit():
    # 32 MiB scoped on v7x (64 MiB physical), 64 MiB on v5e/v6e (128 MiB).
    return min(_vmem_capacity_bytes() // 2, 64 * 1024 * 1024)


def _target_tile_bytes():
    # ~4 MiB output tile on v7x, ~8 MiB on v5e/v6e; never below 2 MiB.
    return max(2 * 1024 * 1024, _default_vmem_limit() // 8)


def _vmem_limit_for(block_bytes):
    """Scoped VMEM limit covering double-buffered in+out blocks, with slack."""
    needed = 2 * block_bytes + (2 << 20)
    cap = (_vmem_capacity_bytes() * 7) // 8
    return int(min(max(_default_vmem_limit(), needed), cap))


def _sublane_pack(dtype):
    """Rows per sublane group: 8 for 4-byte, 16 for 2-byte, 32 for 1-byte."""
    itemsize = jnp.dtype(dtype).itemsize
    return 8 * max(1, 4 // itemsize)


def _round_up(x, m):
    return ((x + m - 1) // m) * m


def _plan_nc_tiling(nc, plane_out_bytes, sublane):
    """Pick (bnc, nc_pad): planes fused per grid step and padded plane count.

    bnc is a multiple of `sublane`, respects the generation-aware byte budget
    (it never falls back to "all planes in one block"), and is additionally
    capped so the grid has >= _MIN_GRID steps whenever the sublane constraint
    allows it.  nc_pad is nc rounded up to a multiple of bnc; the wrapper
    zero-pads the (small) remainder instead of letting the grid collapse or
    the block exceed the VMEM budget.
    """
    # TODO(synk): planes larger than the byte budget still force one
    # sublane-pack per block; split the H axis into the grid if such a block
    # ever exceeds physical VMEM (not reachable for conv-sized planes).
    target = _target_tile_bytes()
    bnc = max(1, target // max(plane_out_bytes, 1))
    bnc = max(sublane, (bnc // sublane) * sublane)
    nc_pad = _round_up(nc, sublane)
    bnc = min(bnc, nc_pad)
    grid_cap = max(sublane, ((nc_pad // _MIN_GRID) // sublane) * sublane)
    bnc = min(bnc, grid_cap)
    nc_pad = _round_up(nc_pad, bnc)
    return bnc, nc_pad


def _pad_leading(arr, rows):
    """Zero-pad the leading (plane) axis up to `rows`."""
    if rows == arr.shape[0]:
        return arr
    widths = [(0, rows - arr.shape[0])] + [(0, 0)] * (arr.ndim - 1)
    return jnp.pad(arr, widths)


# --------------------------------------------------------------------------
# Kernels
# --------------------------------------------------------------------------

def _pad_rows_3d_kernel(x_ref, o_ref, *, pad_t, pad_b):
    """Row-aligned pad (W % 128 == 0): (BNC, H, W) -> (BNC, H_out, W).

    Top/bottom zero strips are full-width (unmasked) stores; the interior is
    one lane-aligned copy.  Pads are static Python ints, so zero-width strips
    compile away.
    """
    bnc, h, w = x_ref.shape
    if pad_t > 0:
        o_ref[:, pl.ds(0, pad_t), :] = jnp.zeros((bnc, pad_t, w), o_ref.dtype)
    if pad_b > 0:
        o_ref[:, pl.ds(pad_t + h, pad_b), :] = jnp.zeros(
            (bnc, pad_b, w), o_ref.dtype)
    o_ref[:, pl.ds(pad_t, h), :] = x_ref[...]


def _pad_flat_kernel(x_ref, o_ref, *, h, w, pad_t, pad_b, pad_l, pad_r):
    """Lane-dense pad on flattened planes: (BNC, H*W) -> (BNC, H_out*W_out).

    Top/bottom-only pads: zero the lead/trail strips and do one interior copy.
    With left/right pads: zero the whole slab once (single lane-dense fill,
    hidden under HBM stalls) and copy each input row to its static offset.
    """
    bnc = x_ref.shape[0]
    in_elems = x_ref.shape[1]          # == h * w
    out_elems = o_ref.shape[1]         # == h_out * w_out
    w_out = w + pad_l + pad_r

    if pad_l == 0 and pad_r == 0:
        lead = pad_t * w
        trail = pad_b * w
        if lead > 0:
            o_ref[:, pl.ds(0, lead)] = jnp.zeros((bnc, lead), o_ref.dtype)
        if trail > 0:
            o_ref[:, pl.ds(lead + in_elems, trail)] = jnp.zeros(
                (bnc, trail), o_ref.dtype)
        o_ref[:, pl.ds(lead, in_elems)] = x_ref[...]
        return

    # General left/right padding: zero the slab, then place each input row.
    o_ref[...] = jnp.zeros((bnc, out_elems), o_ref.dtype)
    if h <= _MAX_STATIC_ROWS:
        for r in range(h):                      # static offsets -> dense stores
            dst = pad_l + (pad_t + r) * w_out
            o_ref[:, pl.ds(dst, w)] = x_ref[:, pl.ds(r * w, w)]
    else:
        def body(r, carry):
            dst = pad_l + (pad_t + r) * w_out
            o_ref[:, pl.ds(dst, w)] = x_ref[:, pl.ds(r * w, w)]
            return carry
        jax.lax.fori_loop(0, h, body, 0)


# --------------------------------------------------------------------------
# Wrapper
# --------------------------------------------------------------------------

def _pad_call(kernel, x_arr, out_shape, in_block, out_block, grid_len, dtype):
    itemsize = jnp.dtype(dtype).itemsize
    block_bytes = (math.prod(in_block) + math.prod(out_block)) * itemsize
    bytes_accessed = (math.prod(x_arr.shape) + math.prod(out_shape)) * itemsize
    in_rank = len(in_block)
    out_rank = len(out_block)
    return pl.pallas_call(
        kernel,
        out_shape=jax.ShapeDtypeStruct(out_shape, dtype),
        grid=(grid_len,),
        in_specs=[pl.BlockSpec(in_block, lambda i: (i,) + (0,) * (in_rank - 1))],
        out_specs=pl.BlockSpec(out_block, lambda i: (i,) + (0,) * (out_rank - 1)),
        compiler_params=pltpu.CompilerParams(
            dimension_semantics=("parallel",),
            vmem_limit_bytes=_vmem_limit_for(block_bytes)),
        cost_estimate=pl.CostEstimate(
            flops=0, transcendentals=0, bytes_accessed=bytes_accessed),
    )(x_arr)


def recycle_conv_forward(x, pad=(0, 0, 0, 0)):
    """Pallas implementation of recycleConv.forward.

    Args:
      x: (N, C, H, W) array (NCHW, matching the PyTorch conv layout).
      pad: (pad_left, pad_right, pad_top, pad_bottom) constant zero padding in
           F.pad ordering for 4-D input.  Defaults to no padding (identity),
           matching the reference's `F.pad(input)` with no pad widths.

    Returns:
      (N, C, H + pt + pb, W + pl + pr) array, same dtype as x.
    """
    pad_l, pad_r, pad_t, pad_b = (int(p) for p in pad)
    if min(pad_l, pad_r, pad_t, pad_b) < 0:
        raise ValueError("negative (cropping) pads are not supported")
    n, c, h, w = x.shape
    h_out = h + pad_t + pad_b
    w_out = w + pad_l + pad_r
    nc = n * c
    dtype = x.dtype
    itemsize = jnp.dtype(dtype).itemsize

    # Fast path: F.pad with zero pad widths is the identity -- no kernel, no
    # copy.  This is the reference module's default behavior.
    if pad_l == 0 and pad_r == 0 and pad_t == 0 and pad_b == 0:
        return x

    if pad_l == 0 and pad_r == 0 and w % 128 == 0:
        # Row-aligned 3-D path: W already lane-aligned, so rows stay as the
        # last dim and all stores are full-width and unmasked.
        bnc, nc_pad = _plan_nc_tiling(nc, h_out * w * itemsize, sublane=1)
        x_p = _pad_leading(x.reshape(nc, h, w), nc_pad)
        kernel = functools.partial(_pad_rows_3d_kernel, pad_t=pad_t, pad_b=pad_b)
        out = _pad_call(kernel, x_p, (nc_pad, h_out, w),
                        (bnc, h, w), (bnc, h_out, w), nc_pad // bnc, dtype)
        return out[:nc].reshape(n, c, h_out, w_out)

    # Lane-dense flattened path: each plane occupies the lane axis, so pads
    # and copies are dense along lanes regardless of how small W / W_out are
    # (no masked vst strips, no VMEM inflation from a narrow last dim).
    in_elems = h * w
    out_elems = h_out * w_out
    bnc, nc_pad = _plan_nc_tiling(nc, out_elems * itemsize,
                                  sublane=_sublane_pack(dtype))
    x_p = _pad_leading(x.reshape(nc, in_elems), nc_pad)
    kernel = functools.partial(_pad_flat_kernel, h=h, w=w, pad_t=pad_t,
                               pad_b=pad_b, pad_l=pad_l, pad_r=pad_r)
    out = _pad_call(kernel, x_p, (nc_pad, out_elems),
                    (bnc, in_elems), (bnc, out_elems), nc_pad // bnc, dtype)
    return out[:nc].reshape(n, c, h_out, w_out)


if __name__ == "__main__":
    # Shapes consistent with the module's conv-style signature:
    # recycleConv(in_channels=4, out_channels=8, width=16, height=16, ...)
    key = jax.random.PRNGKey(0)
    k1, k2, k3 = jax.random.split(key, 3)

    x = jax.random.normal(k1, (2, 4, 16, 16), dtype=jnp.float32)

    # 1) Default / reference path: F.pad with no pad widths == identity.
    out_id = jax.block_until_ready(recycle_conv_forward(x))
    assert out_id.shape == x.shape
    assert bool(jnp.array_equal(out_id, x))

    # 2) Lane-dense flattened path: top/bottom padding only.
    out_tb = jax.block_until_ready(recycle_conv_forward(x, (0, 0, 2, 2)))
    ref_tb = jnp.pad(x, ((0, 0), (0, 0), (2, 2), (0, 0)))
    assert out_tb.shape == ref_tb.shape
    assert bool(jnp.array_equal(out_tb, ref_tb))

    # 3) Lane-dense flattened path: padding on all four sides (general case).
    out_all = jax.block_until_ready(recycle_conv_forward(x, (1, 1, 2, 2)))
    ref_all = jnp.pad(x, ((0, 0), (0, 0), (2, 2), (1, 1)))
    assert out_all.shape == ref_all.shape
    assert bool(jnp.array_equal(out_all, ref_all))

    # 4) Row-aligned 3-D path (W is a multiple of 128), top/bottom padding.
    x2 = jax.random.normal(k2, (1, 8, 8, 128), dtype=jnp.float32)
    out_3d = jax.block_until_ready(recycle_conv_forward(x2, (0, 0, 1, 1)))
    ref_3d = jnp.pad(x2, ((0, 0), (0, 0), (1, 1), (0, 0)))
    assert bool(jnp.array_equal(out_3d, ref_3d))

    # 5) Awkward N*C (not a sublane multiple): plane-count padding path.
    x3 = jax.random.normal(k3, (2, 3, 16, 16), dtype=jnp.float32)
    out_nc = jax.block_until_ready(recycle_conv_forward(x3, (0, 0, 1, 0)))
    ref_nc = jnp.pad(x3, ((0, 0), (0, 0), (1, 0), (0, 0)))
    assert bool(jnp.array_equal(out_nc, ref_nc))

    print("KERNEL_OK")
</pallas_src>

<mosaic_0001>
module attributes {stable_mosaic.version = 11 : i64} {
  func.func @_pad_flat_kernel(%arg0: i32, %arg1: memref<8x256xf32, #tpu.memory_space<vmem>>, %arg2: memref<8x320xf32, #tpu.memory_space<vmem>>) attributes {dimension_semantics = [#tpu.dimension_semantics<parallel>], iteration_bounds = array<i64: 1>, scalar_prefetch = 0 : i64, scratch_operands = 0 : i64, tpu.core_type = #tpu.core_type<tc>, window_params = [{transform_indices = @transform_0, window_bounds = array<i64: 8, 256>}, {transform_indices = @transform_1, window_bounds = array<i64: 8, 320>}]} {
    %cst = arith.constant 0.000000e+00 : f32
    %0 = vector.broadcast %cst : f32 to vector<8x32xf32>
    %c0 = arith.constant 0 : index
    %c0_0 = arith.constant 0 : index
    %1 = vector.load %arg2[%c0, %c0_0] : memref<8x320xf32, #tpu.memory_space<vmem>>, vector<8x32xf32>
    tpu.vector_store %arg2[%c0, %c0_0], %0 {strides = array<i32>} : memref<8x320xf32, #tpu.memory_space<vmem>>, vector<8x32xf32>,
    %cst_1 = arith.constant 0.000000e+00 : f32
    %2 = vector.broadcast %cst_1 : f32 to vector<8x32xf32>
    %c0_2 = arith.constant 0 : index
    %c288 = arith.constant 288 : index
    %3 = vector.load %arg2[%c0_2, %c288] : memref<8x320xf32, #tpu.memory_space<vmem>>, vector<8x32xf32>
    tpu.vector_store %arg2[%c0_2, %c288], %2 {strides = array<i32>} : memref<8x320xf32, #tpu.memory_space<vmem>>, vector<8x32xf32>,
    %c0_3 = arith.constant 0 : index
    %c0_4 = arith.constant 0 : index
    %4 = vector.load %arg1[%c0_3, %c0_4] : memref<8x256xf32, #tpu.memory_space<vmem>>, vector<8x256xf32>
    %c0_5 = arith.constant 0 : index
    %c32 = arith.constant 32 : index
    %5 = vector.load %arg2[%c0_5, %c32] : memref<8x320xf32, #tpu.memory_space<vmem>>, vector<8x256xf32>
    tpu.vector_store %arg2[%c0_5, %c32], %4 {strides = array<i32>} : memref<8x320xf32, #tpu.memory_space<vmem>>, vector<8x256xf32>,
    return
  }
  func.func @transform_0(%arg0: i32) -> (i32, i32) {
    %c0_i32 = arith.constant 0 : i32
    %c0_i32_0 = arith.constant 0 : i32
    return %arg0, %c0_i32 : i32, i32
  }
  func.func @transform_1(%arg0: i32) -> (i32, i32) {
    %c0_i32 = arith.constant 0 : i32
    %c0_i32_0 = arith.constant 0 : i32
    return %arg0, %c0_i32 : i32, i32
  }
}

</mosaic_0001>

<llo_original>
// kernel: tpu_custom_call.1
$region0: #{tpu_custom_call.1}
  #allocation0 [shape = 'u32[]', space=smem, size = 0x4, offset = 0x4, fixed_abs, tag = 'smem constant byte address 0x4 - core index']
  #allocation1 [shape = 'u32[144,128]{1,0:T(1,128)}', space=vmem, size = 0x12000, scoped, tag = 'internal scratch']
  %s0 = inlined_call_operand.hbm [shape: f32[8,256], index: 0, kind: input, shape index: {}]
  %s1 = inlined_call_operand.hbm [shape: f32[8,320], index: 1, kind: output, shape index: {}]
  %s2 = sld [smem:[#allocation0]]
  $region18: #{tpu_custom_call.1} parent=0
    _
  %s4 = ssub.s32 1, %s2
  %s5 = scalar_select 0, %s4, %s2
  $region1: #{tpu_custom_call.1} parent=0
    #allocation2 [shape = 'u8[8192]{0}', space=vmem, size = 0x2000, scoped, tag = 'input window, operand 0, single buffered']
    #allocation3 [shape = 's32[1]{0}', space=sflag, size = 0x4, scoped, tag = 'scoped memory for tpu_custom_call.1']
    #allocation4 [shape = 's32[1]{0}', space=sflag, size = 0x4, scoped, tag = 'scoped memory for tpu_custom_call.1']
    #allocation5 [shape = 'u8[12288]{0}', space=vmem, size = 0x3000, scoped, tag = 'output window, operand 0, single buffered']
    %6 = vsyncpa [#allocation3], 0
    %7 = vsyncpa [#allocation4], 0
    // Predicated region
    $region2: #{tpu_custom_call.1} parent=1 // pred_check
      _
    $region3: #{tpu_custom_call.1} parent=1 // pred_check_branch
      %9 = sbr.rel (0) target = $region5
    $region4: #{tpu_custom_call.1} parent=1 // pred_region
      %s11 = ssub.s32 256, 256
      %12 = vsyncadd [#allocation3], %s11
      %s14 = sshll.u32 [#allocation2], 4
      %s15 = int_to_ptr.vmem [resolvable:$true] %s14
      %17 = dma.hbm_to_vmem [thread:$0]  %s0, 256, %s15, [#allocation3]
    $region5: #{tpu_custom_call.1} parent=1 // pred_fallthru
      _
    // Predicated region
    $region6: #{tpu_custom_call.1} parent=1 // pred_check
      _
    $region7: #{tpu_custom_call.1} parent=1 // pred_check_branch
      %19 = sbr.rel (0) target = $region9
    $region8: #{tpu_custom_call.1} parent=1 // pred_region
      %20 = dma.done [#allocation3], 256
    $region9: #{tpu_custom_call.1} parent=1 // pred_fallthru
      _
    %vm21 = vcmask 261120
    %22 = vst.msk [vmem:[#allocation5] sm:$0xff] %vm21, 0.0
    %vm23 = vcmask 523520
    %24 = vst.msk [vmem:[#allocation5 + $0x10] sm:$0xff] %vm23, 0.0
    %v25 = vld [vmem:[#allocation2] sm:$0xff]
    %v26 = vld [vmem:[#allocation2 + $0x8] sm:$0xff]
    %29 = vrot.lane.b32.xlu0 %v25, 32
    %v30 = vpop.permute.xlu0 %29
    %31 = vrot.lane.b32.xlu0 %v26, 32
    %v32 = vpop.permute.xlu0 %31
    %v33 = vsel %vm21, %v30, %v32
    %vm37 = vcmask 1047808
    %38 = vst.msk [vmem:[#allocation5] sm:$0xff] %vm37, %v30
    %39 = vst [vmem:[#allocation5 + $0x8] sm:$0xff] %v33
    %40 = vst.msk [vmem:[#allocation5 + $0x10] sm:$0xff] %vm21, %v32
    // Predicated region
    $region10: #{tpu_custom_call.1} parent=1 // pred_check
      _
    $region11: #{tpu_custom_call.1} parent=1 // pred_check_branch
      %42 = sbr.rel (0) target = $region13
    $region12: #{tpu_custom_call.1} parent=1 // pred_region
      %s44 = ssub.s32 384, 384
      %45 = vsyncadd [#allocation4], %s44
      %s47 = sshll.u32 [#allocation5], 4
      %s48 = int_to_ptr.vmem [resolvable:$true] %s47
      %50 = dma.vmem_to_hbm [thread:$0]  %s48, 384, %s1, [#allocation4]
    $region13: #{tpu_custom_call.1} parent=1 // pred_fallthru
      _
    // Predicated region
    $region14: #{tpu_custom_call.1} parent=1 // pred_check
      _
    $region15: #{tpu_custom_call.1} parent=1 // pred_check_branch
      %52 = sbr.rel (0) target = $region17
    $region16: #{tpu_custom_call.1} parent=1 // pred_region
      %53 = dma.done [#allocation4], 384
    $region17: #{tpu_custom_call.1} parent=1 // pred_fallthru
      _
    %54 = vsyncpa [#allocation3], 1
    %55 = vsyncpa [#allocation4], 1

</llo_original>
